<compile_context>
chip_gen: v7x
topology: tpu7x:2x2x1
jax: 0.10.0
libtpu: 0.0.40
codegen_flags: <defaults>
</compile_context>

<pallas_src>
from typing import NamedTuple, Optional

import jax
import jax.numpy as jnp
from jax.experimental import pallas as pl
from jax.experimental.pallas import tpu as pltpu


_TM_CAP = 512    # batch-tile cap
_TN_CAP = 1024   # output-feature tile cap  (v7x could push to 2048)
_TK_CAP = 1024   # reduction tile cap       (v7x could push to 2048)


def _round_up(x, m):
    return (x + m - 1) // m * m


class ExpertParams(NamedTuple):
    """Pre-transposed / pre-cast / pre-padded nn.Linear parameters."""
    w_t: jax.Array   # [K_p, N_p]  compute dtype, weight.T zero-padded
    bias: jax.Array  # [1,  N_p]   float32, zero-padded
    f_in: int
    f_out: int
    tn: int
    tk: int


def prepare_expert_params(weight, bias, *, compute_dtype=jnp.bfloat16,
                          block_n=None, block_k=None):
    """One-time (init-time) preparation of nn.Linear parameters.

    weight: [F_out, F_in] (PyTorch layout), bias: [F_out].
    Transposes to [F_in, F_out], casts to compute_dtype, pads to tile
    multiples, and fixes the (tn, tk) tiling so the per-call wrapper never
    touches the weight again.
    """
    F_out, F_in = weight.shape
    N_al = _round_up(F_out, 128)
    K_al = _round_up(F_in, 128)

    if block_n is not None:
        tn = _round_up(block_n, 128)
    else:
        # >=2 N-steps whenever possible so v7x megacore can shard the
        # "parallel" N axis across its 2 TensorCores even when M grid == 1.
        n_steps = max(2 if N_al >= 256 else 1, pl.cdiv(N_al, _TN_CAP))
        tn = _round_up(pl.cdiv(N_al, n_steps), 128)

    if block_k is not None:
        tk = _round_up(block_k, 128)
    else:
        k_steps = max(1, pl.cdiv(K_al, _TK_CAP))
        tk = _round_up(pl.cdiv(K_al, k_steps), 128)

    N_p = _round_up(N_al, tn)
    K_p = _round_up(K_al, tk)

    w_t = weight.astype(compute_dtype).T                       # [F_in, F_out]
    w_t = jnp.pad(w_t, ((0, K_p - F_in), (0, N_p - F_out)))    # [K_p, N_p]
    b = jnp.pad(bias.astype(jnp.float32), (0, N_p - F_out)).reshape(1, N_p)

    return ExpertParams(w_t=w_t, bias=b, f_in=F_in, f_out=F_out, tn=tn, tk=tk)


def _linear_kernel(x_ref, w_ref, b_ref, o_ref, acc_ref):
    # x_ref: (tm, tk), w_ref: (tk, tn) [already transposed], b_ref: (1, tn) f32
    # o_ref: (tm, tn), acc_ref: (tm, tn) f32 accumulator resident across k.
    k = pl.program_id(2)

    @pl.when(k == 0)
    def _():
        # Fold the bias into the accumulator init (saves an epilogue VPU add).
        acc_ref[...] = jnp.broadcast_to(b_ref[...], acc_ref.shape)

    # Plain [m,k] . [k,n] -> MXU, f32 accumulation; no per-tile transpose.
    acc_ref[...] += jnp.dot(x_ref[...], w_ref[...],
                            preferred_element_type=jnp.float32)

    @pl.when(k == pl.num_programs(2) - 1)
    def _():
        o_ref[...] = acc_ref[...].astype(o_ref.dtype)


def expert_net_forward(x, params: ExpertParams, *, block_m=None,
                       weight_buffer_count: Optional[int] = None):
    """Pallas implementation of Expert_net.forward: y = x @ weight.T + bias.

    x:      [B, F_in]
    params: output of prepare_expert_params (weight already transposed,
            cast and padded at init time).
    """
    B, F_in = x.shape
    assert F_in == params.f_in, (F_in, params.f_in)
    out_dtype = x.dtype
    cd = params.w_t.dtype
    K_p, N_p = params.w_t.shape
    tn, tk = params.tn, params.tk

    tm = _round_up(block_m or min(_TM_CAP, _round_up(B, 8)), 8)
    M_p = _round_up(B, tm)

    # Only the (small, per-call) activation is cast / padded here.
    x_c = x.astype(cd)
    if (M_p, K_p) != (B, F_in):
        x_c = jnp.pad(x_c, ((0, M_p - B), (0, K_p - F_in)))

    grid = (M_p // tm, N_p // tn, K_p // tk)

    w_spec_kwargs = {}
    if weight_buffer_count is not None:
        # Deeper buffering of the weight stream if DMA is exposed per K-step.
        w_spec_kwargs["pipeline_mode"] = pl.Buffered(weight_buffer_count)

    x_b = jnp.dtype(cd).itemsize
    o_b = jnp.dtype(out_dtype).itemsize
    cost = pl.CostEstimate(
        flops=2 * M_p * N_p * K_p,
        transcendentals=0,
        bytes_accessed=(M_p * K_p * x_b * (N_p // tn)        # x re-read per j
                        + K_p * N_p * x_b * (M_p // tm)      # w re-read per i
                        + N_p * 4 * (M_p // tm)              # bias
                        + M_p * N_p * o_b))                  # output

    # Explicit VMEM budget: double-buffered x/w/out tiles + bias + f32 acc,
    # with headroom; capped at 56 MiB so it is legal on v7x (64 MiB physical).
    need = (2 * tm * tk * x_b + 2 * tk * tn * x_b + 2 * tm * tn * o_b
            + 2 * tn * 4 + tm * tn * 4)
    vmem_limit = int(min(56 * 2**20, max(32 * 2**20, 2 * need)))

    out_p = pl.pallas_call(
        _linear_kernel,
        out_shape=jax.ShapeDtypeStruct((M_p, N_p), out_dtype),
        grid_spec=pltpu.PrefetchScalarGridSpec(
            num_scalar_prefetch=0,
            grid=grid,
            in_specs=[
                pl.BlockSpec((tm, tk), lambda i, j, k: (i, k)),                  # x
                pl.BlockSpec((tk, tn), lambda i, j, k: (k, j), **w_spec_kwargs), # w^T
                pl.BlockSpec((1, tn), lambda i, j, k: (0, j)),                   # bias
            ],
            out_specs=pl.BlockSpec((tm, tn), lambda i, j, k: (i, j)),
            scratch_shapes=[pltpu.VMEM((tm, tn), jnp.float32)],
        ),
        compiler_params=pltpu.CompilerParams(
            dimension_semantics=("parallel", "parallel", "arbitrary"),
            vmem_limit_bytes=vmem_limit),
        cost_estimate=cost,
    )(x_c, params.w_t, params.bias)

    return out_p[:B, :params.f_out]


def _ref_forward(x, weight, bias):
    return x @ weight.T + bias


if __name__ == "__main__":
    key = jax.random.PRNGKey(0)
    k_x, k_w, k_b = jax.random.split(key, 3)

    batch = 8
    input_shape = 32   # F_in
    output_shape = 32  # F_out

    x = jax.random.normal(k_x, (batch, input_shape), dtype=jnp.float32)
    # Deterministic "Kaiming-ish" init consistent with nn.Linear shapes.
    bound = 1.0 / jnp.sqrt(input_shape)
    weight = jax.random.uniform(k_w, (output_shape, input_shape),
                                minval=-bound, maxval=bound, dtype=jnp.float32)
    bias = jax.random.uniform(k_b, (output_shape,),
                              minval=-bound, maxval=bound, dtype=jnp.float32)

    ref = _ref_forward(x, weight, bias)

    # f32 compute path: tight tolerance.
    params_f32 = prepare_expert_params(weight, bias, compute_dtype=jnp.float32)
    out = jax.block_until_ready(expert_net_forward(x, params_f32))
    assert out.shape == (batch, output_shape)
    assert jnp.allclose(out, ref, atol=1e-5, rtol=1e-5)

    # Default bf16 weights/activations, f32 accumulation (halved HBM traffic,
    # fast MXU path) — the intended production configuration.
    params_bf16 = prepare_expert_params(weight, bias)  # compute_dtype=bf16
    out_bf16 = jax.block_until_ready(expert_net_forward(x, params_bf16))
    assert out_bf16.shape == (batch, output_shape)
    assert jnp.allclose(out_bf16, ref, atol=2e-2, rtol=2e-2)

    print("KERNEL_OK")
</pallas_src>

<mosaic_0001>
module attributes {stable_mosaic.version = 11 : i64} {
  func.func @_linear_kernel(%arg0: i32, %arg1: i32, %arg2: i32, %arg3: memref<8x128xf32, #tpu.memory_space<vmem>>, %arg4: memref<128x128xf32, #tpu.memory_space<vmem>>, %arg5: memref<1x128xf32, #tpu.memory_space<vmem>>, %arg6: memref<8x128xf32, #tpu.memory_space<vmem>>, %arg7: memref<8x128xf32, #tpu.memory_space<vmem>>) attributes {dimension_semantics = [#tpu.dimension_semantics<parallel>, #tpu.dimension_semantics<parallel>, #tpu.dimension_semantics<arbitrary>], iteration_bounds = array<i64: 1, 1, 1>, scalar_prefetch = 0 : i64, scratch_operands = 1 : i64, tpu.core_type = #tpu.core_type<tc>, window_params = [{transform_indices = @transform_0, window_bounds = array<i64: 8, 128>}, {transform_indices = @transform_1, window_bounds = array<i64: 128, 128>}, {transform_indices = @transform_2, window_bounds = array<i64: 1, 128>}, {transform_indices = @transform_3, window_bounds = array<i64: 8, 128>}]} {
    %c0_i32 = arith.constant 0 : i32
    %0 = arith.cmpi eq, %arg2, %c0_i32 : i32
    %1 = arith.extui %0 : i1 to i32
    %c0_i32_0 = arith.constant 0 : i32
    %2 = arith.cmpi ne, %1, %c0_i32_0 : i32
    scf.if %2 {
      %c0_10 = arith.constant 0 : index
      %c0_11 = arith.constant 0 : index
      %12 = vector.load %arg5[%c0_10, %c0_11] : memref<1x128xf32, #tpu.memory_space<vmem>>, vector<1x128xf32>
      %13 = vector.shape_cast %12 : vector<1x128xf32> to vector<1x128xf32>
      %14 = vector.broadcast %13 : vector<1x128xf32> to vector<8x128xf32>
      %c0_12 = arith.constant 0 : index
      %c0_13 = arith.constant 0 : index
      %15 = vector.load %arg7[%c0_12, %c0_13] : memref<8x128xf32, #tpu.memory_space<vmem>>, vector<8x128xf32>
      tpu.vector_store %arg7[%c0_12, %c0_13], %14 {strides = array<i32>} : memref<8x128xf32, #tpu.memory_space<vmem>>, vector<8x128xf32>,
    } else {
    }
    %c0 = arith.constant 0 : index
    %c0_1 = arith.constant 0 : index
    %3 = vector.load %arg7[%c0, %c0_1] : memref<8x128xf32, #tpu.memory_space<vmem>>, vector<8x128xf32>
    %c0_2 = arith.constant 0 : index
    %c0_3 = arith.constant 0 : index
    %4 = vector.load %arg3[%c0_2, %c0_3] : memref<8x128xf32, #tpu.memory_space<vmem>>, vector<8x128xf32>
    %c0_4 = arith.constant 0 : index
    %c0_5 = arith.constant 0 : index
    %5 = vector.load %arg4[%c0_4, %c0_5] : memref<128x128xf32, #tpu.memory_space<vmem>>, vector<128x128xf32>
    %cst = arith.constant dense<0.000000e+00> : vector<8x128xf32>
    %6 = tpu.matmul %4, %5, %cst {dimension_numbers = #tpu.dot_dimension_numbers<[1], [0], [0], [1], [0, 0, 1, 1], [], []>} : vector<8x128xf32>, vector<128x128xf32>, vector<8x128xf32> -> vector<8x128xf32>
    %7 = arith.addf %3, %6 : vector<8x128xf32>
    %c0_6 = arith.constant 0 : index
    %c0_7 = arith.constant 0 : index
    %8 = vector.load %arg7[%c0_6, %c0_7] : memref<8x128xf32, #tpu.memory_space<vmem>>, vector<8x128xf32>
    tpu.vector_store %arg7[%c0_6, %c0_7], %7 {strides = array<i32>} : memref<8x128xf32, #tpu.memory_space<vmem>>, vector<8x128xf32>,
    %c0_i32_8 = arith.constant 0 : i32
    %9 = arith.cmpi eq, %arg2, %c0_i32_8 : i32
    %10 = arith.extui %9 : i1 to i32
    %c0_i32_9 = arith.constant 0 : i32
    %11 = arith.cmpi ne, %10, %c0_i32_9 : i32
    scf.if %11 {
      %c0_10 = arith.constant 0 : index
      %c0_11 = arith.constant 0 : index
      %12 = vector.load %arg7[%c0_10, %c0_11] : memref<8x128xf32, #tpu.memory_space<vmem>>, vector<8x128xf32>
      %c0_12 = arith.constant 0 : index
      %c0_13 = arith.constant 0 : index
      %13 = vector.load %arg6[%c0_12, %c0_13] : memref<8x128xf32, #tpu.memory_space<vmem>>, vector<8x128xf32>
      tpu.vector_store %arg6[%c0_12, %c0_13], %12 {strides = array<i32>} : memref<8x128xf32, #tpu.memory_space<vmem>>, vector<8x128xf32>,
    } else {
    }
    return
  }
  func.func @transform_0(%arg0: i32, %arg1: i32, %arg2: i32) -> (i32, i32) {
    %c0_i32 = arith.constant 0 : i32
    return %arg0, %arg2 : i32, i32
  }
  func.func @transform_1(%arg0: i32, %arg1: i32, %arg2: i32) -> (i32, i32) {
    %c0_i32 = arith.constant 0 : i32
    return %arg2, %arg1 : i32, i32
  }
  func.func @transform_2(%arg0: i32, %arg1: i32, %arg2: i32) -> (i32, i32) {
    %c0_i32 = arith.constant 0 : i32
    %c0_i32_0 = arith.constant 0 : i32
    return %c0_i32, %arg1 : i32, i32
  }
  func.func @transform_3(%arg0: i32, %arg1: i32, %arg2: i32) -> (i32, i32) {
    %c0_i32 = arith.constant 0 : i32
    return %arg0, %arg1 : i32, i32
  }
}

</mosaic_0001>

<llo_original>
// kernel: tpu_custom_call.1
$region0: #{tpu_custom_call.1}
  #allocation0 [shape = 'u32[]', space=smem, size = 0x4, offset = 0x4, fixed_abs, tag = 'smem constant byte address 0x4 - core index']
  #allocation1 [shape = 'u32[144,128]{1,0:T(1,128)}', space=vmem, size = 0x12000, scoped, tag = 'internal scratch']
  #allocation2 [shape = 'f32[8,128]{1,0:T(8,128)}', space=vmem, size = 0x1000, scoped, tag = 'scratch operand']
  %s0 = inlined_call_operand.hbm [shape: f32[8,128], index: 0, kind: input, shape index: {}]
  %s1 = inlined_call_operand.hbm [shape: f32[128,128], index: 1, kind: input, shape index: {}]
  %s2 = inlined_call_operand.vmem [shape: f32[1,128], index: 2, kind: input, shape index: {}]
  %s3 = inlined_call_operand.hbm [shape: f32[8,128], index: 3, kind: output, shape index: {}]
  %s4 = sld [smem:[#allocation0]]
  $region38: #{tpu_custom_call.1} parent=0
    _
  %s6 = ssub.s32 1, %s4
  %s7 = scalar_select 0, %s6, %s4
  $region1: #{tpu_custom_call.1} parent=0
    #allocation3 [shape = 'u8[4096]{0}', space=vmem, size = 0x1000, scoped, tag = 'input window, operand 0, single buffered']
    #allocation4 [shape = 's32[1]{0}', space=sflag, size = 0x4, scoped, tag = 'scoped memory for tpu_custom_call.1']
    #allocation5 [shape = 's32[1]{0}', space=sflag, size = 0x4, scoped, tag = 'scoped memory for tpu_custom_call.1']
    #allocation6 [shape = 'u8[65536]{0}', space=vmem, size = 0x10000, scoped, tag = 'input window, operand 1, single buffered']
    #allocation7 [shape = 's32[1]{0}', space=sflag, size = 0x4, scoped, tag = 'scoped memory for tpu_custom_call.1']
    #allocation8 [shape = 'u8[4096]{0}', space=vmem, size = 0x1000, scoped, tag = 'output window, operand 0, single buffered']
    %8 = vsyncpa [#allocation4], 0
    %9 = vsyncpa [#allocation7], 0
    %10 = vsyncpa [#allocation5], 0
    // Predicated region
    $region2: #{tpu_custom_call.1} parent=1 // pred_check
      _
    $region3: #{tpu_custom_call.1} parent=1 // pred_check_branch
      %12 = sbr.rel (0) target = $region5
    $region4: #{tpu_custom_call.1} parent=1 // pred_region
      %s14 = ssub.s32 128, 128
      %15 = vsyncadd [#allocation4], %s14
      %s17 = sshll.u32 [#allocation3], 4
      %s18 = int_to_ptr.vmem [resolvable:$true] %s17
      %20 = dma.hbm_to_vmem [thread:$0]  %s0, 128, %s18, [#allocation4]
    $region5: #{tpu_custom_call.1} parent=1 // pred_fallthru
      _
    // Predicated region
    $region6: #{tpu_custom_call.1} parent=1 // pred_check
      _
    $region7: #{tpu_custom_call.1} parent=1 // pred_check_branch
      %22 = sbr.rel (0) target = $region9
    $region8: #{tpu_custom_call.1} parent=1 // pred_region
      %s24 = ssub.s32 2048, 2048
      %25 = vsyncadd [#allocation7], %s24
      %s26 = sshll.u32 [#allocation6], 4
      %s27 = int_to_ptr.vmem [resolvable:$true] %s26
      %32 = dma.hbm_to_vmem [thread:$0]  %s1, 2048, %s27, [#allocation7], 128, 128, 8
    $region9: #{tpu_custom_call.1} parent=1 // pred_fallthru
      _
    // Predicated region
    $region10: #{tpu_custom_call.1} parent=1 // pred_check
      _
    $region11: #{tpu_custom_call.1} parent=1 // pred_check_branch
      %34 = sbr.rel (0) target = $region13
    $region12: #{tpu_custom_call.1} parent=1 // pred_region
      _
    $region13: #{tpu_custom_call.1} parent=1 // pred_fallthru
      _
    // Predicated region
    $region14: #{tpu_custom_call.1} parent=1 // pred_check
      _
    $region15: #{tpu_custom_call.1} parent=1 // pred_check_branch
      %36 = sbr.rel (0) target = $region17
    $region16: #{tpu_custom_call.1} parent=1 // pred_region
      %37 = dma.done [#allocation4], 128
    $region17: #{tpu_custom_call.1} parent=1 // pred_fallthru
      _
    // Predicated region
    $region18: #{tpu_custom_call.1} parent=1 // pred_check
      _
    $region19: #{tpu_custom_call.1} parent=1 // pred_check_branch
      %39 = sbr.rel (0) target = $region21
    $region20: #{tpu_custom_call.1} parent=1 // pred_region
      %40 = dma.done [#allocation7], 2048
    $region21: #{tpu_custom_call.1} parent=1 // pred_fallthru
      _
    %p41 = scmp.eq.s32.totalorder 0, 0
    // Predicated region
    $region22: #{tpu_custom_call.1} parent=1 // pred_check
      %p42 = pneg %p41
    $region23: #{tpu_custom_call.1} parent=1 // pred_check_branch
      %44 = sbr.rel (%p42) target = $region25
    $region24: #{tpu_custom_call.1} parent=1 // pred_region
      %v45 = vld [vmem:[%s2] sm:$0x1]
      %v47 = vlaneseq
      %v48 = vshrl.u32 %v47, 7
      %v49 = vsub.s32 0, %v48
      %v50 = vrot.slane %v45, %v49
      %52 = vst [vmem:[#allocation2] sm:$0xff] %v50
    $region25: #{tpu_custom_call.1} parent=1 // pred_fallthru
      _
    %v53 = vld [vmem:[#allocation2] sm:$0xff]
    %v54 = vld [vmem:[#allocation3] sm:$0xff]
    %v55 = vld [vmem:[#allocation6] sm:$0xff]
    %v56 = vld [vmem:[#allocation6 + $0x8] sm:$0xff]
    %v57 = vld [vmem:[#allocation6 + $0x10] sm:$0xff]
    %v58 = vld [vmem:[#allocation6 + $0x18] sm:$0xff]
    %v59 = vld [vmem:[#allocation6 + $0x20] sm:$0xff]
    %v60 = vld [vmem:[#allocation6 + $0x28] sm:$0xff]
    %v61 = vld [vmem:[#allocation6 + $0x30] sm:$0xff]
    %v62 = vld [vmem:[#allocation6 + $0x38] sm:$0xff]
    %v63 = vld [vmem:[#allocation6 + $0x40] sm:$0xff]
    %v64 = vld [vmem:[#allocation6 + $0x48] sm:$0xff]
    %v65 = vld [vmem:[#allocation6 + $0x50] sm:$0xff]
    %v66 = vld [vmem:[#allocation6 + $0x58] sm:$0xff]
    %v67 = vld [vmem:[#allocation6 + $0x60] sm:$0xff]
    %v68 = vld [vmem:[#allocation6 + $0x68] sm:$0xff]
    %v69 = vld [vmem:[#allocation6 + $0x70] sm:$0xff]
    %v70 = vld [vmem:[#allocation6 + $0x78] sm:$0xff]
    %71 = vmatprep.subr.mxu0 0.0
    %72 = vmatpush1.msra.mxu0 %v55
    %73 = vmatprep.subr.mxu0 0.0
    %74 = vmatpush1.msra.mxu0 %v56
    %75 = vmatprep.subr.mxu0 0.0
    %76 = vmatpush1.msra.mxu0 %v57
    %77 = vmatprep.subr.mxu0 0.0
    %78 = vmatpush1.msra.mxu0 %v58
    %79 = vmatprep.subr.mxu0 0.0
    %80 = vmatpush1.msra.mxu0 %v59
    %81 = vmatprep.subr.mxu0 0.0
    %82 = vmatpush1.msra.mxu0 %v60
    %83 = vmatprep.subr.mxu0 0.0
    %84 = vmatpush1.msra.mxu0 %v61
    %85 = vmatprep.subr.mxu0 0.0
    %86 = vmatpush1.msra.mxu0 %v62
    %87 = vmatprep.subr.mxu0 0.0
    %88 = vmatpush1.msra.mxu0 %v63
    %89 = vmatprep.subr.mxu0 0.0
    %90 = vmatpush1.msra.mxu0 %v64
    %91 = vmatprep.subr.mxu0 0.0
    %92 = vmatpush1.msra.mxu0 %v65
    %93 = vmatprep.subr.mxu0 0.0
    %94 = vmatpush1.msra.mxu0 %v66
    %95 = vmatprep.subr.mxu0 0.0
    %96 = vmatpush1.msra.mxu0 %v67
    %97 = vmatprep.subr.mxu0 0.0
    %98 = vmatpush1.msra.mxu0 %v68
    %99 = vmatprep.subr.mxu0 0.0
    %100 = vmatpush1.msra.mxu0 %v69
    %101 = vmatprep.subr.mxu0 0.0
    %102 = vmatpush1.msra.mxu0 %v70
    %103 = vmatprep.subr.mxu0 0.0
    %104 = vmatpush1.msra.mxu0 0.0
    %105 = vmatprep.subr.mxu0 0.0
    %106 = vmatpush1.msra.mxu0 0.0
    %107 = vmatprep.subr.mxu0 0.0
    %108 = vmatpush1.msra.mxu0 0.0
    %109 = vmatprep.subr.mxu0 0.0
    %110 = vmatpush1.msra.mxu0 0.0
    %111 = vmatprep.subr.mxu0 0.0
    %112 = vmatpush1.msra.mxu0 0.0
    %113 = vmatprep.subr.mxu0 0.0
    %114 = vmatpush1.msra.mxu0 0.0
    %115 = vmatprep.subr.mxu0 0.0
    %116 = vmatpush1.msra.mxu0 0.0
    %117 = vmatprep.subr.mxu0 0.0
    %118 = vmatpush1.msra.mxu0 0.0
    %119 = vmatprep.subr.mxu0 0.0
    %120 = vmatpush1.msra.mxu0 0.0
    %121 = vmatprep.subr.mxu0 0.0
    %122 = vmatpush1.msra.mxu0 0.0
    %123 = vmatprep.subr.mxu0 0.0
    %124 = vmatpush1.msra.mxu0 0.0
    %125 = vmatprep.subr.mxu0 0.0
    %126 = vmatpush1.msra.mxu0 0.0
    %127 = vmatprep.subr.mxu0 0.0
    %128 = vmatpush1.msra.mxu0 0.0
    %129 = vmatprep.subr.mxu0 0.0
    %130 = vmatpush1.msra.mxu0 0.0
    %131 = vmatprep.subr.mxu0 0.0
    %132 = vmatpush1.msra.mxu0 0.0
    %133 = vmatprep.subr.mxu0 0.0
    %134 = vmatpush1.msra.mxu0 0.0
    %135 = vmatprep.mubr.f32.mxu0 0.0
    %136 = vmatmul.mubr.f32.gmra.mrb[0].mxu0 %v54
    %v137 = vpop.f32.mrb[0].mxu0
    %v138 = vadd.f32 0.0, %v137
    %v139 = vpop.f32.mrb[0].mxu0
    %140 = vdwg.mxu0
    %v141 = vadd.f32 %v53, %v138
    %142 = vst [vmem:[#allocation2] sm:$0xff] %v141
    // Predicated region
    $region26: #{tpu_custom_call.1} parent=1 // pred_check
      %p143 = pneg %p41
    $region27: #{tpu_custom_call.1} parent=1 // pred_check_branch
      %145 = sbr.rel (%p143) target = $region29
    $region28: #{tpu_custom_call.1} parent=1 // pred_region
      %v146 = vld [vmem:[#allocation2] sm:$0xff]
      %147 = vst [vmem:[#allocation8] sm:$0xff] %v146
    $region29: #{tpu_custom_call.1} parent=1 // pred_fallthru
      _
    // Predicated region
    $region30: #{tpu_custom_call.1} parent=1 // pred_check
      _
    $region31: #{tpu_custom_call.1} parent=1 // pred_check_branch
      %149 = sbr.rel (0) target = $region33
    $region32: #{tpu_custom_call.1} parent=1 // pred_region
      %s151 = ssub.s32 128, 128
      %152 = vsyncadd [#allocation5], %s151
      %s154 = sshll.u32 [#allocation8], 4
      %s155 = int_to_ptr.vmem [resolvable:$true] %s154
      %157 = dma.vmem_to_hbm [thread:$0]  %s155, 128, %s3, [#allocation5]
    $region33: #{tpu_custom_call.1} parent=1 // pred_fallthru
      _
    // Predicated region
    $region34: #{tpu_custom_call.1} parent=1 // pred_check
      _
    $region35: #{tpu_custom_call.1} parent=1 // pred_check_branch
      %159 = sbr.rel (0) target = $region37
    $region36: #{tpu_custom_call.1} parent=1 // pred_region
      %160 = dma.done [#allocation5], 128
    $region37: #{tpu_custom_call.1} parent=1 // pred_fallthru
      _
    %161 = vsyncpa [#allocation4], 1
    %162 = vsyncpa [#allocation7], 1
    %163 = vsyncpa [#allocation5], 1

</llo_original>
